<compile_context>
chip_gen: v7x
topology: tpu7x:2x2x1
jax: 0.10.0
libtpu: 0.0.40
codegen_flags: <defaults>
</compile_context>

<pallas_src>
import functools

import jax
import jax.numpy as jnp
from jax.experimental import pallas as pl
from jax.experimental.pallas import tpu as pltpu

IN_FEATURES = 11
OUT_FEATURES = 3


def slp_kernel(x_ref, w_hi_ref, w_lo_ref, b_ref, o_ref):
    # x_ref:   (tile, 11) f32 VMEM block (batch-major, straight from HBM).
    # w_hi/lo: (11, 3) bf16 VMEM-resident split of weight.T (hi + lo ~= f32).
    # b_ref:   (1, 3) f32 VMEM-resident bias row.
    # o_ref:   (tile, 3) f32 VMEM block.
    x = x_ref[...]
    x_hi = x.astype(jnp.bfloat16)
    x_lo = (x - x_hi.astype(jnp.float32)).astype(jnp.bfloat16)
    # bf16x3 decomposition: (x_hi+x_lo)(w_hi+w_lo) minus the negligible lo*lo
    # term -> ~f32 accuracy, accumulated in f32 by the MXU.
    acc = jnp.dot(x_hi, w_hi_ref[...], preferred_element_type=jnp.float32)
    acc = acc + jnp.dot(x_lo, w_hi_ref[...], preferred_element_type=jnp.float32)
    acc = acc + jnp.dot(x_hi, w_lo_ref[...], preferred_element_type=jnp.float32)
    o_ref[...] = (acc + b_ref[...]).astype(o_ref.dtype)


def _round_up(n, m):
    return ((n + m - 1) // m) * m


def _choose_tile(batch, tb):
    """Rows per block. Single block for small batches; else ~>=4 aligned tiles."""
    if batch <= tb:
        return batch  # full-dim block: no 8-row alignment requirement
    # Aim for >=4 tiles (keeps both v7x TensorCores busy), floor 1024 rows,
    # capped by the requested tb; multiple of 8 for the sublane constraint.
    t = max(1024, _round_up(-(-batch // 4), 8))
    return min(_round_up(tb, 8), t)


@functools.partial(jax.jit, static_argnames=("tb",))
def slp_forward(x, weight, bias, *, tb=4096):
    """PyTorch-equivalent forward: x (B, 11), weight (3, 11), bias (3,) -> (B, 3)."""
    B, nin = x.shape
    nout = weight.shape[0]

    tile = _choose_tile(B, tb)
    grid = pl.cdiv(B, tile)

    # Tiny parameter prep (99 + 3 elements) in the wrapper: transpose + hi/lo
    # bf16 split of the weight so the kernel's MXU passes reconstruct f32.
    wt = weight.T.astype(jnp.float32)                      # (11, 3)
    w_hi = wt.astype(jnp.bfloat16)
    w_lo = (wt - w_hi.astype(jnp.float32)).astype(jnp.bfloat16)
    b_row = bias.reshape(1, nout).astype(jnp.float32)      # (1, 3)

    return pl.pallas_call(
        slp_kernel,
        out_shape=jax.ShapeDtypeStruct((B, nout), jnp.float32),
        grid=(grid,),
        in_specs=[
            pl.BlockSpec((tile, nin), lambda i: (i, 0)),   # x block (batch-major)
            pl.BlockSpec((nin, nout), lambda i: (0, 0)),   # w_hi, resident
            pl.BlockSpec((nin, nout), lambda i: (0, 0)),   # w_lo, resident
            pl.BlockSpec((1, nout), lambda i: (0, 0)),     # bias, resident
        ],
        out_specs=pl.BlockSpec((tile, nout), lambda i: (i, 0)),
        compiler_params=pltpu.CompilerParams(
            dimension_semantics=("parallel",),             # megacore on v7x
        ),
    )(x, w_hi, w_lo, b_row)


if __name__ == "__main__":
    key = jax.random.PRNGKey(0)
    kw, kb, k1, k2, k3 = jax.random.split(key, 5)

    # Test data is rounded to bf16-representable f32 values: the MXU consumes
    # bf16 operands (the kernel's hi/lo split), so with bf16-exact inputs the
    # kernel result matches the plain f32 reference to accumulation rounding,
    # isolating layout / tiling / partial-block correctness.
    def _bf16_grid(a):
        return a.astype(jnp.bfloat16).astype(jnp.float32)

    bound = 1.0 / (IN_FEATURES ** 0.5)
    weight = _bf16_grid(jax.random.uniform(
        kw, (OUT_FEATURES, IN_FEATURES), minval=-bound, maxval=bound,
        dtype=jnp.float32))
    bias = _bf16_grid(jax.random.uniform(
        kb, (OUT_FEATURES,), minval=-bound, maxval=bound, dtype=jnp.float32))

    def ref(xv):
        return xv @ weight.T + bias

    # 1) Tiny batch -> single full-array block (no grid tiling).
    x1 = _bf16_grid(jax.random.normal(k1, (8, IN_FEATURES), dtype=jnp.float32))
    y1 = slp_forward(x1, weight, bias)
    jax.block_until_ready(y1)
    assert y1.shape == (8, OUT_FEATURES)
    assert jnp.allclose(y1, ref(x1), atol=1e-5, rtol=1e-5)

    # 2) Multi-tile grid, batch divisible by the tile.
    x2 = _bf16_grid(jax.random.normal(k2, (512, IN_FEATURES), dtype=jnp.float32))
    y2 = slp_forward(x2, weight, bias, tb=128)
    jax.block_until_ready(y2)
    assert y2.shape == (512, OUT_FEATURES)
    assert jnp.allclose(y2, ref(x2), atol=1e-5, rtol=1e-5)

    # 3) Multi-tile grid with a partial final tile (no host-side padding).
    x3 = _bf16_grid(jax.random.normal(k3, (300, IN_FEATURES), dtype=jnp.float32))
    y3 = slp_forward(x3, weight, bias, tb=128)
    jax.block_until_ready(y3)
    assert y3.shape == (300, OUT_FEATURES)
    assert jnp.allclose(y3, ref(x3), atol=1e-5, rtol=1e-5)

    print("KERNEL_OK")
</pallas_src>

<mosaic_0001>
module attributes {stable_mosaic.version = 11 : i64} {
  func.func @slp_kernel(%arg0: i32, %arg1: memref<8x11xf32, #tpu.memory_space<vmem>>, %arg2: memref<11x3xbf16, #tpu.memory_space<vmem>>, %arg3: memref<11x3xbf16, #tpu.memory_space<vmem>>, %arg4: memref<1x3xf32, #tpu.memory_space<vmem>>, %arg5: memref<8x3xf32, #tpu.memory_space<vmem>>) attributes {dimension_semantics = [#tpu.dimension_semantics<parallel>], iteration_bounds = array<i64: 1>, scalar_prefetch = 0 : i64, scratch_operands = 0 : i64, tpu.core_type = #tpu.core_type<tc>, window_params = [{transform_indices = @transform_0, window_bounds = array<i64: 8, 11>}, {pipeline_mode = #tpu.pipeline_mode<synchronous>, transform_indices = @transform_1, window_bounds = array<i64: 11, 3>}, {pipeline_mode = #tpu.pipeline_mode<synchronous>, transform_indices = @transform_2, window_bounds = array<i64: 11, 3>}, {pipeline_mode = #tpu.pipeline_mode<synchronous>, transform_indices = @transform_3, window_bounds = array<i64: 1, 3>}, {transform_indices = @transform_4, window_bounds = array<i64: 8, 3>}]} {
    %c0 = arith.constant 0 : index
    %c0_0 = arith.constant 0 : index
    %0 = vector.load %arg1[%c0, %c0_0] : memref<8x11xf32, #tpu.memory_space<vmem>>, vector<8x11xf32>
    %1 = arith.truncf %0 : vector<8x11xf32> to vector<8x11xbf16>
    %2 = arith.extf %1 : vector<8x11xbf16> to vector<8x11xf32>
    %3 = arith.subf %0, %2 : vector<8x11xf32>
    %4 = arith.truncf %3 : vector<8x11xf32> to vector<8x11xbf16>
    %c0_1 = arith.constant 0 : index
    %c0_2 = arith.constant 0 : index
    %5 = vector.load %arg2[%c0_1, %c0_2] : memref<11x3xbf16, #tpu.memory_space<vmem>>, vector<11x3xbf16>
    %cst = arith.constant dense<0.000000e+00> : vector<8x3xf32>
    %6 = tpu.matmul %1, %5, %cst {dimension_numbers = #tpu.dot_dimension_numbers<[1], [0], [0], [1], [0, 0, 1, 1], [], []>} : vector<8x11xbf16>, vector<11x3xbf16>, vector<8x3xf32> -> vector<8x3xf32>
    %c0_3 = arith.constant 0 : index
    %c0_4 = arith.constant 0 : index
    %7 = vector.load %arg2[%c0_3, %c0_4] : memref<11x3xbf16, #tpu.memory_space<vmem>>, vector<11x3xbf16>
    %cst_5 = arith.constant dense<0.000000e+00> : vector<8x3xf32>
    %8 = tpu.matmul %4, %7, %cst_5 {dimension_numbers = #tpu.dot_dimension_numbers<[1], [0], [0], [1], [0, 0, 1, 1], [], []>} : vector<8x11xbf16>, vector<11x3xbf16>, vector<8x3xf32> -> vector<8x3xf32>
    %9 = arith.addf %6, %8 : vector<8x3xf32>
    %c0_6 = arith.constant 0 : index
    %c0_7 = arith.constant 0 : index
    %10 = vector.load %arg3[%c0_6, %c0_7] : memref<11x3xbf16, #tpu.memory_space<vmem>>, vector<11x3xbf16>
    %cst_8 = arith.constant dense<0.000000e+00> : vector<8x3xf32>
    %11 = tpu.matmul %1, %10, %cst_8 {dimension_numbers = #tpu.dot_dimension_numbers<[1], [0], [0], [1], [0, 0, 1, 1], [], []>} : vector<8x11xbf16>, vector<11x3xbf16>, vector<8x3xf32> -> vector<8x3xf32>
    %12 = arith.addf %9, %11 : vector<8x3xf32>
    %c0_9 = arith.constant 0 : index
    %c0_10 = arith.constant 0 : index
    %13 = vector.load %arg4[%c0_9, %c0_10] : memref<1x3xf32, #tpu.memory_space<vmem>>, vector<1x3xf32>
    %14 = vector.broadcast %13 : vector<1x3xf32> to vector<8x3xf32>
    %15 = arith.addf %12, %14 : vector<8x3xf32>
    %c0_11 = arith.constant 0 : index
    %c0_12 = arith.constant 0 : index
    %16 = vector.load %arg5[%c0_11, %c0_12] : memref<8x3xf32, #tpu.memory_space<vmem>>, vector<8x3xf32>
    tpu.vector_store %arg5[%c0_11, %c0_12], %15 {strides = array<i32>} : memref<8x3xf32, #tpu.memory_space<vmem>>, vector<8x3xf32>,
    return
  }
  func.func @transform_0(%arg0: i32) -> (i32, i32) {
    %c0_i32 = arith.constant 0 : i32
    %c0_i32_0 = arith.constant 0 : i32
    return %arg0, %c0_i32 : i32, i32
  }
  func.func @transform_1(%arg0: i32) -> (i32, i32) {
    %c0_i32 = arith.constant 0 : i32
    %c0_i32_0 = arith.constant 0 : i32
    %c0_i32_1 = arith.constant 0 : i32
    return %c0_i32, %c0_i32_0 : i32, i32
  }
  func.func @transform_2(%arg0: i32) -> (i32, i32) {
    %c0_i32 = arith.constant 0 : i32
    %c0_i32_0 = arith.constant 0 : i32
    %c0_i32_1 = arith.constant 0 : i32
    return %c0_i32, %c0_i32_0 : i32, i32
  }
  func.func @transform_3(%arg0: i32) -> (i32, i32) {
    %c0_i32 = arith.constant 0 : i32
    %c0_i32_0 = arith.constant 0 : i32
    %c0_i32_1 = arith.constant 0 : i32
    return %c0_i32, %c0_i32_0 : i32, i32
  }
  func.func @transform_4(%arg0: i32) -> (i32, i32) {
    %c0_i32 = arith.constant 0 : i32
    %c0_i32_0 = arith.constant 0 : i32
    return %arg0, %c0_i32 : i32, i32
  }
}

</mosaic_0001>

<llo_original>
// kernel: slp_forward.1
$region0: #{slp_forward.1}
  #allocation0 [shape = 'u32[]', space=smem, size = 0x4, offset = 0x4, fixed_abs, tag = 'smem constant byte address 0x4 - core index']
  #allocation1 [shape = 'u32[144,128]{1,0:T(1,128)}', space=vmem, size = 0x12000, scoped, tag = 'internal scratch']
  %s0 = inlined_call_operand.vmem [shape: f32[8,11], index: 0, kind: input, shape index: {}]
  %s1 = inlined_call_operand.vmem [shape: bf16[11,3], index: 1, kind: input, shape index: {}]
  %s2 = inlined_call_operand.vmem [shape: bf16[11,3], index: 2, kind: input, shape index: {}]
  %s3 = inlined_call_operand.vmem [shape: f32[1,3], index: 3, kind: input, shape index: {}]
  %s4 = inlined_call_operand.vmem [shape: f32[8,3], index: 4, kind: output, shape index: {}]
  %s5 = sld [smem:[#allocation0]]
  $region26: #{slp_forward.1} parent=0
    _
  %s7 = ssub.s32 1, %s5
  %s8 = scalar_select 0, %s7, %s5
  // Predicated region
  $region2: #{slp_forward.1} parent=0 // pred_check
    _
  $region3: #{slp_forward.1} parent=0 // pred_check_branch
    %10 = sbr.rel (0) target = $region5
  $region4: #{slp_forward.1} parent=0 // pred_region
    _
  $region5: #{slp_forward.1} parent=0 // pred_fallthru
    _
  // Predicated region
  $region6: #{slp_forward.1} parent=0 // pred_check
    _
  $region7: #{slp_forward.1} parent=0 // pred_check_branch
    %12 = sbr.rel (0) target = $region9
  $region8: #{slp_forward.1} parent=0 // pred_region
    _
  $region9: #{slp_forward.1} parent=0 // pred_fallthru
    _
  // Predicated region
  $region10: #{slp_forward.1} parent=0 // pred_check
    _
  $region11: #{slp_forward.1} parent=0 // pred_check_branch
    %14 = sbr.rel (0) target = $region13
  $region12: #{slp_forward.1} parent=0 // pred_region
    _
  $region13: #{slp_forward.1} parent=0 // pred_fallthru
    _
  // Predicated region
  $region14: #{slp_forward.1} parent=0 // pred_check
    _
  $region15: #{slp_forward.1} parent=0 // pred_check_branch
    %16 = sbr.rel (0) target = $region17
  $region16: #{slp_forward.1} parent=0 // pred_region
    _
  $region17: #{slp_forward.1} parent=0 // pred_fallthru
    _
  %v18 = vld [vmem:[%s0] sm:$0xff]
  %v19 = vpack.c.bf16 %v18, %v18
  %v20 = vunpack.c.l.bf16 %v19
  %v21 = vsub.f32 %v18, %v20
  %v22 = vpack.c.bf16 %v21, %v21
  %v23 = vld [vmem:[%s1] sm:$0xf]
  %v24 = vld [vmem:[%s1 + $0x4] sm:$0x3]
  %v27 = vunpack.c.l.b16 %v23
  %v28 = vunpack.c.l.b16 %v24
  %v29 = vpack.c.b16 %v28, %v27
  %vm30 = vcmask 89088
  %v32 = vsel %vm30, %v22, 0
  %vm34 = vcmask 1044480
  %vm35 = vcmask 1045504
  %v36 = vsel %vm34, 4294967295, 65535
  %v37 = vsel %vm35, %v36, 0
  %v39 = vand.u32 %v29, %v37
  %41 = vmatprep.subr.bf16.mxu0 0
  %42 = vmatpush1.bf16.msra.mxu0 %v39
  %43 = vmatprep.subr.bf16.mxu0 0
  %44 = vmatpush1.bf16.msra.mxu0 0
  %45 = vmatprep.subr.bf16.mxu0 0
  %46 = vmatpush1.bf16.msra.mxu0 0
  %47 = vmatprep.subr.bf16.mxu0 0
  %48 = vmatpush1.bf16.msra.mxu0 0
  %49 = vmatprep.subr.bf16.mxu0 0
  %50 = vmatpush1.bf16.msra.mxu0 0
  %51 = vmatprep.subr.bf16.mxu0 0
  %52 = vmatpush1.bf16.msra.mxu0 0
  %53 = vmatprep.subr.bf16.mxu0 0
  %54 = vmatpush1.bf16.msra.mxu0 0
  %55 = vmatprep.subr.bf16.mxu0 0
  %56 = vmatpush1.bf16.msra.mxu0 0
  %57 = vmatprep.subr.bf16.mxu0 0
  %58 = vmatpush1.bf16.msra.mxu0 0
  %59 = vmatprep.subr.bf16.mxu0 0
  %60 = vmatpush1.bf16.msra.mxu0 0
  %61 = vmatprep.subr.bf16.mxu0 0
  %62 = vmatpush1.bf16.msra.mxu0 0
  %63 = vmatprep.subr.bf16.mxu0 0
  %64 = vmatpush1.bf16.msra.mxu0 0
  %65 = vmatprep.subr.bf16.mxu0 0
  %66 = vmatpush1.bf16.msra.mxu0 0
  %67 = vmatprep.subr.bf16.mxu0 0
  %68 = vmatpush1.bf16.msra.mxu0 0
  %69 = vmatprep.subr.bf16.mxu0 0
  %70 = vmatpush1.bf16.msra.mxu0 0
  %71 = vmatprep.subr.bf16.mxu0 0
  %72 = vmatpush1.bf16.msra.mxu0 0
  %73 = vmatprep.mubr.bf16.mxu0 0
  %74 = vmatmul.mubr.bf16.gmra.mrb[0].mxu0 %v32
  %v75 = vpop.f32.mrb[0].mxu0
  %v76 = vadd.f32 0.0, %v75
  %v77 = vpop.f32.mrb[0].mxu0
  %v78 = vpop.f32.mrb[0].mxu0
  %v79 = vpop.f32.mrb[0].mxu0
  %80 = vdwg.mxu0
  %v82 = vsel %vm30, %v19, 0
  %84 = vmatprep.subr.bf16.mxu0 0
  %85 = vmatpush1.bf16.msra.mxu0 %v39
  %86 = vmatprep.subr.bf16.mxu0 0
  %87 = vmatpush1.bf16.msra.mxu0 0
  %88 = vmatprep.subr.bf16.mxu0 0
  %89 = vmatpush1.bf16.msra.mxu0 0
  %90 = vmatprep.subr.bf16.mxu0 0
  %91 = vmatpush1.bf16.msra.mxu0 0
  %92 = vmatprep.subr.bf16.mxu0 0
  %93 = vmatpush1.bf16.msra.mxu0 0
  %94 = vmatprep.subr.bf16.mxu0 0
  %95 = vmatpush1.bf16.msra.mxu0 0
  %96 = vmatprep.subr.bf16.mxu0 0
  %97 = vmatpush1.bf16.msra.mxu0 0
  %98 = vmatprep.subr.bf16.mxu0 0
  %99 = vmatpush1.bf16.msra.mxu0 0
  %100 = vmatprep.subr.bf16.mxu0 0
  %101 = vmatpush1.bf16.msra.mxu0 0
  %102 = vmatprep.subr.bf16.mxu0 0
  %103 = vmatpush1.bf16.msra.mxu0 0
  %104 = vmatprep.subr.bf16.mxu0 0
  %105 = vmatpush1.bf16.msra.mxu0 0
  %106 = vmatprep.subr.bf16.mxu0 0
  %107 = vmatpush1.bf16.msra.mxu0 0
  %108 = vmatprep.subr.bf16.mxu0 0
  %109 = vmatpush1.bf16.msra.mxu0 0
  %110 = vmatprep.subr.bf16.mxu0 0
  %111 = vmatpush1.bf16.msra.mxu0 0
  %112 = vmatprep.subr.bf16.mxu0 0
  %113 = vmatpush1.bf16.msra.mxu0 0
  %114 = vmatprep.subr.bf16.mxu0 0
  %115 = vmatpush1.bf16.msra.mxu0 0
  %116 = vmatprep.mubr.bf16.mxu0 0
  %117 = vmatmul.mubr.bf16.gmra.mrb[0].mxu0 %v82
  %v118 = vpop.f32.mrb[0].mxu0
  %v119 = vadd.f32 %v76, %v118
  %v120 = vpop.f32.mrb[0].mxu0
  %v121 = vpop.f32.mrb[0].mxu0
  %v122 = vpop.f32.mrb[0].mxu0
  %123 = vdwg.mxu0
  %v124 = vld [vmem:[%s2] sm:$0xf]
  %v125 = vld [vmem:[%s2 + $0x4] sm:$0x3]
  %v128 = vunpack.c.l.b16 %v124
  %v129 = vunpack.c.l.b16 %v125
  %v130 = vpack.c.b16 %v129, %v128
  %v132 = vand.u32 %v130, %v37
  %134 = vmatprep.subr.bf16.mxu0 0
  %135 = vmatpush1.bf16.msra.mxu0 %v132
  %136 = vmatprep.subr.bf16.mxu0 0
  %137 = vmatpush1.bf16.msra.mxu0 0
  %138 = vmatprep.subr.bf16.mxu0 0
  %139 = vmatpush1.bf16.msra.mxu0 0
  %140 = vmatprep.subr.bf16.mxu0 0
  %141 = vmatpush1.bf16.msra.mxu0 0
  %142 = vmatprep.subr.bf16.mxu0 0
  %143 = vmatpush1.bf16.msra.mxu0 0
  %144 = vmatprep.subr.bf16.mxu0 0
  %145 = vmatpush1.bf16.msra.mxu0 0
  %146 = vmatprep.subr.bf16.mxu0 0
  %147 = vmatpush1.bf16.msra.mxu0 0
  %148 = vmatprep.subr.bf16.mxu0 0
  %149 = vmatpush1.bf16.msra.mxu0 0
  %150 = vmatprep.subr.bf16.mxu0 0
  %151 = vmatpush1.bf16.msra.mxu0 0
  %152 = vmatprep.subr.bf16.mxu0 0
  %153 = vmatpush1.bf16.msra.mxu0 0
  %154 = vmatprep.subr.bf16.mxu0 0
  %155 = vmatpush1.bf16.msra.mxu0 0
  %156 = vmatprep.subr.bf16.mxu0 0
  %157 = vmatpush1.bf16.msra.mxu0 0
  %158 = vmatprep.subr.bf16.mxu0 0
  %159 = vmatpush1.bf16.msra.mxu0 0
  %160 = vmatprep.subr.bf16.mxu0 0
  %161 = vmatpush1.bf16.msra.mxu0 0
  %162 = vmatprep.subr.bf16.mxu0 0
  %163 = vmatpush1.bf16.msra.mxu0 0
  %164 = vmatprep.subr.bf16.mxu0 0
  %165 = vmatpush1.bf16.msra.mxu0 0
  %166 = vmatprep.mubr.bf16.mxu0 0
  %167 = vmatmul.mubr.bf16.gmra.mrb[0].mxu0 %v82
  %v168 = vpop.f32.mrb[0].mxu0
  %v169 = vadd.f32 0.0, %v168
  %v170 = vpop.f32.mrb[0].mxu0
  %v171 = vpop.f32.mrb[0].mxu0
  %v172 = vpop.f32.mrb[0].mxu0
  %173 = vdwg.mxu0
  %v174 = vadd.f32 %v119, %v169
  %v175 = vld [vmem:[%s3] sm:$0x1]
  %v177 = vlaneseq
  %v178 = vshrl.u32 %v177, 7
  %v179 = vsub.s32 0, %v178
  %v180 = vrot.slane %v175, %v179
  %v182 = vadd.f32 %v174, %v180
  %vm183 = vcmask 23552
  %184 = vst.msk [vmem:[%s4] sm:$0xff] %vm183, %v182
  // Predicated region
  $region18: #{slp_forward.1} parent=0 // pred_check
    _
  $region19: #{slp_forward.1} parent=0 // pred_check_branch
    %186 = sbr.rel (0) target = $region21
  $region20: #{slp_forward.1} parent=0 // pred_region
    _
  $region21: #{slp_forward.1} parent=0 // pred_fallthru
    _
  // Predicated region
  $region22: #{slp_forward.1} parent=0 // pred_check
    _
  $region23: #{slp_forward.1} parent=0 // pred_check_branch
    %188 = sbr.rel (0) target = $region25
  $region24: #{slp_forward.1} parent=0 // pred_region
    _
  $region25: #{slp_forward.1} parent=0 // pred_fallthru
    _

</llo_original>
